<compile_context>
chip_gen: v7x
topology: tpu7x:2x2x1
jax: 0.10.0
libtpu: 0.0.40
codegen_flags: <defaults>
</compile_context>

<pallas_src>
import jax
import jax.numpy as jnp
from jax import lax
from jax.experimental import pallas as pl
from jax.experimental.pallas import tpu as pltpu


def _round_up(x: int, m: int) -> int:
    return (x + m - 1) // m * m


def _make_mean_pool_kernel(*, S: int, TS: int):
    """Kernel closure over the static seq length / seq tile."""
    ragged = (S % TS) != 0
    rem = S % TS  # valid rows in the last (partial) seq tile

    def kernel(x_ref, m_ref, o_ref):
        # x_ref: (TB, TS, H)  activations
        # m_ref: (TB, 1, TS)  mask (exact zeros in seq padding)
        # o_ref: (TB, 1, H)   f32 running sum, resident across the seq axis
        s_step = pl.program_id(1)

        @pl.when(s_step == 0)
        def _init():
            o_ref[...] = jnp.zeros_like(o_ref)

        def accumulate(x_tile):
            # (TB,1,TS) . (TB,TS,H) -> (TB,1,H), MXU with f32 accumulation.
            o_ref[...] += lax.dot_general(
                m_ref[...], x_tile,
                dimension_numbers=(((2,), (1,)), ((0,), (0,))),
                preferred_element_type=jnp.float32)

        if not ragged:
            accumulate(x_ref[...])
        else:
            last = pl.num_programs(1) - 1

            @pl.when(s_step != last)
            def _body():
                accumulate(x_ref[...])

            @pl.when(s_step == last)
            def _tail():
                # Zero out-of-bounds seq rows: the padded mask is already 0
                # there, but 0 * (stale NaN/Inf) would still poison the dot.
                valid = lax.broadcasted_iota(jnp.int32, (1, TS, 1), 1) < rem
                accumulate(jnp.where(valid, x_ref[...], 0.0))

    return kernel


def mean_pooling(last_hidden_state, attention_masks, *,
                 block_bytes=8 * 1024 * 1024):
    """Mean pooling matching PyTorch MeanPooling.forward semantics."""
    B, S, H = last_hidden_state.shape
    assert attention_masks.shape == (B, S)

    x = last_hidden_state
    if not jnp.issubdtype(x.dtype, jnp.floating):
        x = x.astype(jnp.float32)
    itemsize = jnp.dtype(x.dtype).itemsize
    m_dtype = x.dtype                      # 0/1 exactly representable in bf16

    Hp = _round_up(H, 128)                 # VMEM lane footprint (accounting only)

    # ---- batch tile --------------------------------------------------------
    TB = min(8, B)
    if B >= 2:
        # >= 2 blocks on the "parallel" batch axis so both v7x TCs get work.
        TB = min(TB, pl.cdiv(B, 2))
    # keep a single x block under ~block_bytes even for very large H
    while TB > 1 and TB * 128 * Hp * itemsize > block_bytes:
        TB = max(1, TB // 2)
    # Note: for B == 1 the parallel axis has a single block (one v7x TC idle);
    # splitting the seq reduction into parallel partial sums is not done here.

    # ---- seq tile ----------------------------------------------------------
    pack = max(1, 4 // itemsize)           # elements per 32-bit word (1/2/4)
    sub = 8 * pack                         # sublane packing multiple (8/16/32)
    row_bytes = TB * Hp * itemsize
    S_single = _round_up(S, sub)
    if S_single * row_bytes <= block_bytes:
        TS = S_single                      # whole sequence in one step
    else:
        TS = max(128, ((block_bytes // row_bytes) // 128) * 128)
        TS = min(TS, _round_up(S, 128))

    grid_b = pl.cdiv(B, TB)
    grid_s = pl.cdiv(S, TS)
    Sp = grid_s * TS

    # ---- tiny mask-side prep (never touches the big activations) ----------
    m = attention_masks.astype(m_dtype)                    # (B, S)
    if Sp != S:
        m = jnp.pad(m, ((0, 0), (0, Sp - S)))              # zeros ⇒ no contribution
    m = m.reshape(B, 1, Sp)

    # exact denominator from the cheap (B, S) mask, matches torch.clamp(min=1e-9)
    sum_mask = jnp.maximum(
        jnp.sum(attention_masks.astype(jnp.float32), axis=1, keepdims=True), 1e-9)

    # ---- explicit VMEM budget ----------------------------------------------
    def _blk_bytes(shape, dt):
        s = list(shape)
        s[-1] = _round_up(s[-1], 128)
        s[-2] = _round_up(s[-2], 8)
        n = 1
        for d in s:
            n *= d
        return n * jnp.dtype(dt).itemsize

    budget = (2 * _blk_bytes((TB, TS, H), x.dtype)
              + 2 * _blk_bytes((TB, 1, TS), m_dtype)
              + 2 * _blk_bytes((TB, 1, H), jnp.float32))
    vmem_limit = int(min(max(budget * 3 // 2 + (2 << 20), 24 << 20), 48 << 20))

    kernel = _make_mean_pool_kernel(S=S, TS=TS)

    sums = pl.pallas_call(
        kernel,
        out_shape=jax.ShapeDtypeStruct((B, 1, H), jnp.float32),
        grid=(grid_b, grid_s),             # seq (reduction) axis last
        in_specs=[
            pl.BlockSpec((TB, TS, H), lambda b, s: (b, s, 0)),
            pl.BlockSpec((TB, 1, TS), lambda b, s: (b, 0, s)),
        ],
        out_specs=pl.BlockSpec((TB, 1, H), lambda b, s: (b, 0, 0)),
        compiler_params=pltpu.CompilerParams(
            dimension_semantics=("parallel", "arbitrary"),
            vmem_limit_bytes=vmem_limit,
        ),
    )(x, m)

    return sums[:, 0, :] / sum_mask        # exact divide, (B, H) float32


def mean_pooling_ref(last_hidden_state, attention_masks):
    # Pure-JAX reference mirroring the PyTorch forward exactly.
    mask = attention_masks[..., None].astype(jnp.float32)
    mask = jnp.broadcast_to(mask, last_hidden_state.shape)
    sum_embeddings = jnp.sum(last_hidden_state.astype(jnp.float32) * mask, axis=1)
    sum_mask = jnp.maximum(jnp.sum(mask, axis=1), 1e-9)
    return sum_embeddings / sum_mask


if __name__ == "__main__":
    B, S, H = 2, 8, 32
    key = jax.random.PRNGKey(0)
    k1, k2 = jax.random.split(key)

    last_hidden_state = jax.random.normal(k1, (B, S, H), dtype=jnp.float32)
    attention_masks = (jax.random.uniform(k2, (B, S)) > 0.3).astype(jnp.int32)

    out = jax.block_until_ready(mean_pooling(last_hidden_state, attention_masks))
    ref = mean_pooling_ref(last_hidden_state, attention_masks)

    assert out.shape == (B, H)
    # Division is exact now; tolerance covers possible bf16-pass MXU f32 matmul
    # at default precision.
    assert jnp.allclose(out, ref, atol=3e-3, rtol=3e-3), (
        float(jnp.max(jnp.abs(out - ref)))
    )

    print("KERNEL_OK")
</pallas_src>

<mosaic_0001>
module attributes {stable_mosaic.version = 11 : i64} {
  func.func @kernel(%arg0: i32, %arg1: i32, %arg2: memref<1x8x32xf32, #tpu.memory_space<vmem>>, %arg3: memref<1x1x8xf32, #tpu.memory_space<vmem>>, %arg4: memref<1x1x32xf32, #tpu.memory_space<vmem>>) attributes {dimension_semantics = [#tpu.dimension_semantics<parallel>, #tpu.dimension_semantics<arbitrary>], iteration_bounds = array<i64: 2, 1>, scalar_prefetch = 0 : i64, scratch_operands = 0 : i64, tpu.core_type = #tpu.core_type<tc>, window_params = [{transform_indices = @transform_0, window_bounds = array<i64: 1, 8, 32>}, {transform_indices = @transform_1, window_bounds = array<i64: 1, 1, 8>}, {transform_indices = @transform_2, window_bounds = array<i64: 1, 1, 32>}]} {
    %c0_i32 = arith.constant 0 : i32
    %0 = arith.cmpi eq, %arg1, %c0_i32 : i32
    %1 = arith.extui %0 : i1 to i32
    %c0_i32_0 = arith.constant 0 : i32
    %2 = arith.cmpi ne, %1, %c0_i32_0 : i32
    scf.if %2 {
      %cst_12 = arith.constant 0.000000e+00 : f32
      %9 = vector.broadcast %cst_12 : f32 to vector<1x1x32xf32>
      %c0_13 = arith.constant 0 : index
      %c0_14 = arith.constant 0 : index
      %c0_15 = arith.constant 0 : index
      %10 = vector.load %arg4[%c0_13, %c0_14, %c0_15] : memref<1x1x32xf32, #tpu.memory_space<vmem>>, vector<1x1x32xf32>
      tpu.vector_store %arg4[%c0_13, %c0_14, %c0_15], %9 {strides = array<i32>} : memref<1x1x32xf32, #tpu.memory_space<vmem>>, vector<1x1x32xf32>,
    } else {
    }
    %c0 = arith.constant 0 : index
    %c0_1 = arith.constant 0 : index
    %c0_2 = arith.constant 0 : index
    %3 = vector.load %arg2[%c0, %c0_1, %c0_2] : memref<1x8x32xf32, #tpu.memory_space<vmem>>, vector<1x8x32xf32>
    %c0_3 = arith.constant 0 : index
    %c0_4 = arith.constant 0 : index
    %c0_5 = arith.constant 0 : index
    %4 = vector.load %arg4[%c0_3, %c0_4, %c0_5] : memref<1x1x32xf32, #tpu.memory_space<vmem>>, vector<1x1x32xf32>
    %c0_6 = arith.constant 0 : index
    %c0_7 = arith.constant 0 : index
    %c0_8 = arith.constant 0 : index
    %5 = vector.load %arg3[%c0_6, %c0_7, %c0_8] : memref<1x1x8xf32, #tpu.memory_space<vmem>>, vector<1x1x8xf32>
    %cst = arith.constant dense<0.000000e+00> : vector<1x1x32xf32>
    %6 = tpu.matmul %5, %3, %cst {dimension_numbers = #tpu.dot_dimension_numbers<[2], [1], [1], [2], [0, 0, 0, 1, 1, 2], [0], [0]>} : vector<1x1x8xf32>, vector<1x8x32xf32>, vector<1x1x32xf32> -> vector<1x1x32xf32>
    %7 = arith.addf %4, %6 : vector<1x1x32xf32>
    %c0_9 = arith.constant 0 : index
    %c0_10 = arith.constant 0 : index
    %c0_11 = arith.constant 0 : index
    %8 = vector.load %arg4[%c0_9, %c0_10, %c0_11] : memref<1x1x32xf32, #tpu.memory_space<vmem>>, vector<1x1x32xf32>
    tpu.vector_store %arg4[%c0_9, %c0_10, %c0_11], %7 {strides = array<i32>} : memref<1x1x32xf32, #tpu.memory_space<vmem>>, vector<1x1x32xf32>,
    return
  }
  func.func @transform_0(%arg0: i32, %arg1: i32) -> (i32, i32, i32) {
    %c0_i32 = arith.constant 0 : i32
    %c0_i32_0 = arith.constant 0 : i32
    return %arg0, %arg1, %c0_i32 : i32, i32, i32
  }
  func.func @transform_1(%arg0: i32, %arg1: i32) -> (i32, i32, i32) {
    %c0_i32 = arith.constant 0 : i32
    %c0_i32_0 = arith.constant 0 : i32
    return %arg0, %c0_i32, %arg1 : i32, i32, i32
  }
  func.func @transform_2(%arg0: i32, %arg1: i32) -> (i32, i32, i32) {
    %c0_i32 = arith.constant 0 : i32
    %c0_i32_0 = arith.constant 0 : i32
    %c0_i32_1 = arith.constant 0 : i32
    return %arg0, %c0_i32, %c0_i32_0 : i32, i32, i32
  }
}

</mosaic_0001>

<llo_original>
// kernel: tpu_custom_call.1
$region0: #{tpu_custom_call.1}
  #allocation0 [shape = 'u32[]', space=smem, size = 0x4, offset = 0x4, fixed_abs, tag = 'smem constant byte address 0x4 - core index']
  #allocation1 [shape = 'u32[144,128]{1,0:T(1,128)}', space=vmem, size = 0x12000, scoped, tag = 'internal scratch']
  %s0 = inlined_call_operand.hbm [shape: f32[2,8,32], index: 0, kind: input, shape index: {}]
  %s1 = inlined_call_operand.vmem [shape: f32[2,1,8], index: 1, kind: input, shape index: {}]
  %s2 = inlined_call_operand.hbm [shape: f32[2,1,32], index: 2, kind: output, shape index: {}]
  %s3 = sld [smem:[#allocation0]]
  $region49: #{tpu_custom_call.1} parent=0
    _
  %s5 = ssub.s32 1, %s3
  %s6 = scalar_select 0, %s5, %s3
  $region1: #{tpu_custom_call.1} parent=0
    #allocation2 [shape = 'u8[8192]{0}', space=vmem, size = 0x2000, scoped, tag = 'input window, operand 0']
    #allocation3 [shape = 's32[2]{0}', space=sflag, size = 0x8, scoped, tag = 'scoped memory for tpu_custom_call.1']
    #allocation4 [shape = 's32[2]{0}', space=sflag, size = 0x8, scoped, tag = 'scoped memory for tpu_custom_call.1']
    #allocation5 [shape = 'u8[1024]{0}', space=vmem, size = 0x400, scoped, tag = 'output window, operand 0']
    %7 = vsyncpa [#allocation3], 0
    %s8 = scalar_lea.sflag [#allocation3], 1
    %9 = vsyncpa %s8, 0
    %10 = vsyncpa [#allocation4], 0
    %s11 = scalar_lea.sflag [#allocation4], 1
    %12 = vsyncpa %s11, 0
    loop: start=0, step=1, limit=4
    $region2: #{tpu_custom_call.1} parent=1 // loop_pre_header
      _
    $region3: #{tpu_custom_call.1} parent=1 // loop_header
      %s14 = sphi 0, %s18
      %p15 = scmp.ge.s32.totalorder %s14, 4
      %s21 = sphi 0, %s33
      %s22 = sphi 0, %s29
      %s23 = sphi 0, %s21
      %s24 = sphi 0, %s22
      %s25 = sphi 0, %s23
      %s26 = sphi 0, %s24
      %s38 = sphi 0, %s40
      %s41 = sphi 0, %s38
      %s42 = sphi 0, %s41
      %s58 = sphi 0, %s42
      %s66 = sphi 0, %s68
      %s69 = sphi 0, %s66
      %s70 = sphi 0, %s69
      %s86 = sphi 0, %s70
      %s92 = sphi 0, %s94
      %s95 = sphi 0, %s92
      %s96 = sphi 0, %s95
      %s112 = sphi 0, %s96
    $region4: #{tpu_custom_call.1} parent=1 // loop_header_branch
      %17 = sbr.rel (%p15) target = $region8
    $region5: #{tpu_custom_call.1} parent=1 // loop_body
      %s19 = ssub.s32 %s14, 1
      %s20 = ssub.s32 %s14, 2
      %s27 = sadd.s32 1, %s22
      %p28 = scmp.ge.s32.totalorder %s27, 1
      %s29 = scalar_select %p28, 0, %s27
      %s30 = sadd.s32 1, %s21
      %s31 = scalar_select %p28, %s30, %s21
      %p32 = scmp.ge.s32.totalorder %s31, 2
      %s33 = scalar_select %p32, 0, %s31
      %s34 = ssub.s32 %s21, %s33
      %s35 = ssub.s32 %s22, %s29
      %s36 = sor.u32 %s34, %s35
      %p37 = scmp.eq.s32.totalorder %s36, 0
      %s39 = sadd.s32 %s38, 1
      %s40 = scalar_select %p37, %s38, %s39
      %p43 = pneg %p37
      %p44 = scmp.eq.s32.totalorder %s14, 1
      %p45 = por %p43, %p44
      %p46 = scmp.ne.s32.totalorder %s38, %s41
      %p47 = scmp.eq.s32.totalorder %s14, 0
      %p48 = por %p46, %p47
      %p49 = scmp.ne.s32.totalorder %s38, %s41
      %p50 = scmp.eq.s32.totalorder %s19, 1
      %p51 = por %p49, %p50
      %p52 = scmp.ne.s32.totalorder %s41, %s42
      %p53 = scmp.eq.s32.totalorder %s19, 0
      %p54 = por %p52, %p53
      %p55 = scmp.ne.s32.totalorder %s41, %s42
      %p56 = scmp.eq.s32.totalorder %s20, 1
      %p57 = por %p55, %p56
      %p59 = scmp.ne.s32.totalorder %s42, %s58
      %p60 = scmp.eq.s32.totalorder %s20, 0
      %p61 = por %p59, %p60
      %s62 = ssub.s32 %s21, %s33
      %s63 = ssub.s32 %s22, %s29
      %s64 = sor.u32 %s62, %s63
      %p65 = scmp.eq.s32.totalorder %s64, 0
      %s67 = sadd.s32 %s66, 1
      %s68 = scalar_select %p65, %s66, %s67
      %p71 = pneg %p65
      %p72 = scmp.eq.s32.totalorder %s14, 1
      %p73 = por %p71, %p72
      %p74 = scmp.ne.s32.totalorder %s66, %s69
      %p75 = scmp.eq.s32.totalorder %s14, 0
      %p76 = por %p74, %p75
      %p77 = scmp.ne.s32.totalorder %s66, %s69
      %p78 = scmp.eq.s32.totalorder %s19, 1
      %p79 = por %p77, %p78
      %p80 = scmp.ne.s32.totalorder %s69, %s70
      %p81 = scmp.eq.s32.totalorder %s19, 0
      %p82 = por %p80, %p81
      %p83 = scmp.ne.s32.totalorder %s69, %s70
      %p84 = scmp.eq.s32.totalorder %s20, 1
      %p85 = por %p83, %p84
      %p87 = scmp.ne.s32.totalorder %s70, %s86
      %p88 = scmp.eq.s32.totalorder %s20, 0
      %p89 = por %p87, %p88
      %s90 = ssub.s32 %s21, %s33
      %p91 = scmp.eq.s32.totalorder %s90, 0
      %s93 = sadd.s32 %s92, 1
      %s94 = scalar_select %p91, %s92, %s93
      %p97 = pneg %p91
      %p98 = scmp.eq.s32.totalorder %s14, 1
      %p99 = por %p97, %p98
      %p100 = scmp.ne.s32.totalorder %s92, %s95
      %p101 = scmp.eq.s32.totalorder %s14, 0
      %p102 = por %p100, %p101
      %p103 = scmp.ne.s32.totalorder %s92, %s95
      %p104 = scmp.eq.s32.totalorder %s19, 1
      %p105 = por %p103, %p104
      %p106 = scmp.ne.s32.totalorder %s95, %s96
      %p107 = scmp.eq.s32.totalorder %s19, 0
      %p108 = por %p106, %p107
      %p109 = scmp.ne.s32.totalorder %s95, %s96
      %p110 = scmp.eq.s32.totalorder %s20, 1
      %p111 = por %p109, %p110
      %p113 = scmp.ne.s32.totalorder %s96, %s112
      %p114 = scmp.eq.s32.totalorder %s20, 0
      %p115 = por %p113, %p114
      %p116 = scmp.le.s32.totalorder 1, %s14
      %p117 = scmp.lt.s32.totalorder %s14, 3
      %p118 = pnand %p116, %p117
      %p119 = pneg %p118
      // Predicated region
      $region9: #{tpu_custom_call.1} parent=5 // pred_check
        _
      $region10: #{tpu_custom_call.1} parent=5 // pred_check_branch
        %121 = sbr.rel (%p118) target = $region12
      $region11: #{tpu_custom_call.1} parent=5 // pred_region
        %s122 = ssub.s32 %s14, 1
      $region12: #{tpu_custom_call.1} parent=5 // pred_fallthru
        _
      %p123 = scmp.lt.s32.totalorder %s14, 2
      // Predicated region
      $region13: #{tpu_custom_call.1} parent=5 // pred_check
        %p124 = pneg %p123
      $region14: #{tpu_custom_call.1} parent=5 // pred_check_branch
        %126 = sbr.rel (%p124) target = $region16
      $region15: #{tpu_custom_call.1} parent=5 // pred_region
        // Predicated region
        $region17: #{tpu_custom_call.1} parent=15 // pred_check
          %p127 = pneg %p48
        $region18: #{tpu_custom_call.1} parent=15 // pred_check_branch
          %129 = sbr.rel (%p127) target = $region20
        $region19: #{tpu_custom_call.1} parent=15 // pred_region
          %s130 = sand.u32 %s38, 1
          %s131 = scalar_lea.sflag [#allocation3], %s130
          %s132 = sand.u32 %s38, 1
          %s133 = smul.addr %s132, 8
          %s134 = scalar_lea.vmem [#allocation2], %s133
          %s136 = ssub.s32 128, 128
          %137 = vsyncadd %s131, %s136
          %s138 = sadd.s32 %s22, %s21
          %s139 = smul.addr %s138, 128
          %s140 = scalar_lea.hbm %s0, %s139
          %s142 = sshll.u32 %s134, 4
          %s143 = int_to_ptr.vmem [resolvable:$true] %s142
          %145 = dma.hbm_to_vmem [thread:$0]  %s140, 128, %s143, %s131
        $region20: #{tpu_custom_call.1} parent=15 // pred_fallthru
          _
        // Predicated region
        $region21: #{tpu_custom_call.1} parent=15 // pred_check
          %p146 = pneg %p76
        $region22: #{tpu_custom_call.1} parent=15 // pred_check_branch
          %148 = sbr.rel (%p146) target = $region24
        $region23: #{tpu_custom_call.1} parent=15 // pred_region
          %p149 = scmp.lt.s32.totalorder %s21, 1
          %s150 = scalar_select %p149, %s21, 1
          %p151 = scmp.lt.s32.totalorder %s22, 0
          %s152 = scalar_select %p151, %s22, 0
          %s153 = sadd.s32 %s152, %s150
          %s154 = scalar_lea.vmem %s1, %s153
        $region24: #{tpu_custom_call.1} parent=15 // pred_fallthru
          _
      $region16: #{tpu_custom_call.1} parent=5 // pred_fallthru
        _
      %p155 = scmp.le.s32.totalorder 1, %s14
      %p156 = scmp.lt.s32.totalorder %s14, 3
      %p157 = pnand %p155, %p156
      %p158 = pneg %p157
      // Predicated region
      $region25: #{tpu_custom_call.1} parent=5 // pred_check
        _
      $region26: #{tpu_custom_call.1} parent=5 // pred_check_branch
        %160 = sbr.rel (%p157) target = $region28
      $region27: #{tpu_custom_call.1} parent=5 // pred_region
        %s161 = ssub.s32 %s14, 1
        %s162 = sand.u32 %s41, 1
        %s163 = scalar_lea.sflag [#allocation3], %s162
        %s164 = sand.u32 %s41, 1
        %s165 = smul.addr %s164, 8
        %s166 = scalar_lea.vmem [#allocation2], %s165
        // Predicated region
        $region29: #{tpu_custom_call.1} parent=27 // pred_check
          %p167 = pneg %p54
        $region30: #{tpu_custom_call.1} parent=27 // pred_check_branch
          %169 = sbr.rel (%p167) target = $region32
        $region31: #{tpu_custom_call.1} parent=27 // pred_region
          %170 = dma.done %s163, 128
        $region32: #{tpu_custom_call.1} parent=27 // pred_fallthru
          _
        %s171 = sand.u32 %s41, 1
        %s172 = scalar_lea.sflag [#allocation3], %s171
        %s173 = sand.u32 %s41, 1
        %s174 = smul.addr %s173, 8
        %s175 = scalar_lea.vmem [#allocation2], %s174
        %p176 = pneg %p54
        %p177 = pneg %p51
        %p178 = scmp.lt.s32.totalorder %s23, 1
        %s179 = scalar_select %p178, %s23, 1
        %p180 = scmp.lt.s32.totalorder %s24, 0
        %s181 = scalar_select %p180, %s24, 0
        %s182 = sadd.s32 %s181, %s179
        %s183 = scalar_lea.vmem %s1, %s182
        %p184 = pneg %p82
        %p185 = pneg %p79
        %p186 = pneg %p108
        %p187 = pneg %p105
        %s188 = sand.u32 %s95, 1
        %s189 = scalar_lea.sflag [#allocation4], %s188
        %s190 = sand.u32 %s95, 1
        %s191 = scalar_lea.vmem [#allocation5], %s190
        %p192 = scmp.lt.s32.totalorder %s23, 1
        %s193 = scalar_select %p192, %s23, 1
        %p194 = scmp.lt.s32.totalorder %s24, 0
        %s195 = scalar_select %p194, %s24, 0
        %s196 = sadd.s32 %s195, %s193
        %s197 = scalar_lea.vmem %s1, %s196
        %p198 = scmp.eq.s32.totalorder %s24, 0
        // Predicated region
        $region33: #{tpu_custom_call.1} parent=27 // pred_check
          %p199 = pneg %p198
        $region34: #{tpu_custom_call.1} parent=27 // pred_check_branch
          %201 = sbr.rel (%p199) target = $region36
        $region35: #{tpu_custom_call.1} parent=27 // pred_region
          %vm202 = vcmask 253952
          %203 = vst.msk [vmem:[%s191] sm:$0x1] %vm202, 0.0
        $region36: #{tpu_custom_call.1} parent=27 // pred_fallthru
          _
        %v204 = vld [vmem:[%s166] sm:$0xff]
        %v205 = vld [vmem:[%s191] sm:$0x1]
        %v206 = vld [vmem:[%s197] sm:$0x1]
        %vm207 = vcmask 64512
        %v209 = vsel %vm207, %v206, 0
        %211 = vmatprep.subr.mxu0 0.0
        %212 = vmatpush1.msra.mxu0 %v204
        %213 = vmatprep.subr.mxu0 0.0
        %214 = vmatpush1.msra.mxu0 0.0
        %215 = vmatprep.subr.mxu0 0.0
        %216 = vmatpush1.msra.mxu0 0.0
        %217 = vmatprep.subr.mxu0 0.0
        %218 = vmatpush1.msra.mxu0 0.0
        %219 = vmatprep.subr.mxu0 0.0
        %220 = vmatpush1.msra.mxu0 0.0
        %221 = vmatprep.subr.mxu0 0.0
        %222 = vmatpush1.msra.mxu0 0.0
        %223 = vmatprep.subr.mxu0 0.0
        %224 = vmatpush1.msra.mxu0 0.0
        %225 = vmatprep.subr.mxu0 0.0
        %226 = vmatpush1.msra.mxu0 0.0
        %227 = vmatprep.subr.mxu0 0.0
        %228 = vmatpush1.msra.mxu0 0.0
        %229 = vmatprep.subr.mxu0 0.0
        %230 = vmatpush1.msra.mxu0 0.0
        %231 = vmatprep.subr.mxu0 0.0
        %232 = vmatpush1.msra.mxu0 0.0
        %233 = vmatprep.subr.mxu0 0.0
        %234 = vmatpush1.msra.mxu0 0.0
        %235 = vmatprep.subr.mxu0 0.0
        %236 = vmatpush1.msra.mxu0 0.0
        %237 = vmatprep.subr.mxu0 0.0
        %238 = vmatpush1.msra.mxu0 0.0
        %239 = vmatprep.subr.mxu0 0.0
        %240 = vmatpush1.msra.mxu0 0.0
        %241 = vmatprep.subr.mxu0 0.0
        %242 = vmatpush1.msra.mxu0 0.0
        %243 = vmatprep.subr.mxu0 0.0
        %244 = vmatpush1.msra.mxu0 0.0
        %245 = vmatprep.subr.mxu0 0.0
        %246 = vmatpush1.msra.mxu0 0.0
        %247 = vmatprep.subr.mxu0 0.0
        %248 = vmatpush1.msra.mxu0 0.0
        %249 = vmatprep.subr.mxu0 0.0
        %250 = vmatpush1.msra.mxu0 0.0
        %251 = vmatprep.subr.mxu0 0.0
        %252 = vmatpush1.msra.mxu0 0.0
        %253 = vmatprep.subr.mxu0 0.0
        %254 = vmatpush1.msra.mxu0 0.0
        %255 = vmatprep.subr.mxu0 0.0
        %256 = vmatpush1.msra.mxu0 0.0
        %257 = vmatprep.subr.mxu0 0.0
        %258 = vmatpush1.msra.mxu0 0.0
        %259 = vmatprep.subr.mxu0 0.0
        %260 = vmatpush1.msra.mxu0 0.0
        %261 = vmatprep.subr.mxu0 0.0
        %262 = vmatpush1.msra.mxu0 0.0
        %263 = vmatprep.subr.mxu0 0.0
        %264 = vmatpush1.msra.mxu0 0.0
        %265 = vmatprep.subr.mxu0 0.0
        %266 = vmatpush1.msra.mxu0 0.0
        %267 = vmatprep.subr.mxu0 0.0
        %268 = vmatpush1.msra.mxu0 0.0
        %269 = vmatprep.subr.mxu0 0.0
        %270 = vmatpush1.msra.mxu0 0.0
        %271 = vmatprep.subr.mxu0 0.0
        %272 = vmatpush1.msra.mxu0 0.0
        %273 = vmatprep.subr.mxu0 0.0
        %274 = vmatpush1.msra.mxu0 0.0
        %275 = vmatprep.mubr.f32.mxu0 0.0
        %276 = vmatmul.mubr.f32.gmra.mrb[0].mxu0 %v209
        %v277 = vpop.f32.mrb[0].mxu0
        %v278 = vadd.f32 0.0, %v277
        %v279 = vpop.f32.mrb[0].mxu0
        %280 = vdwg.mxu0
        %v281 = vadd.f32 %v205, %v278
        %vm282 = vcmask 253952
        %283 = vst.msk [vmem:[%s191] sm:$0x1] %vm282, %v281
        %s284 = sand.u32 %s95, 1
        %s285 = scalar_lea.sflag [#allocation4], %s284
        %s286 = sand.u32 %s95, 1
        %s287 = scalar_lea.vmem [#allocation5], %s286
        // Predicated region
        $region37: #{tpu_custom_call.1} parent=27 // pred_check
          %p288 = pneg %p105
        $region38: #{tpu_custom_call.1} parent=27 // pred_check_branch
          %290 = sbr.rel (%p288) target = $region40
        $region39: #{tpu_custom_call.1} parent=27 // pred_region
          %s292 = ssub.s32 16, 16
          %293 = vsyncadd %s285, %s292
          %s294 = smul.addr %s23, 16
          %s295 = scalar_lea.hbm %s2, %s294
          %s297 = sshll.u32 %s287, 4
          %s298 = int_to_ptr.vmem [resolvable:$true] %s297
          %300 = dma.vmem_to_hbm [thread:$0]  %s298, 16, %s295, %s285
        $region40: #{tpu_custom_call.1} parent=27 // pred_fallthru
          _
      $region28: #{tpu_custom_call.1} parent=5 // pred_fallthru
        _
      %p301 = scmp.le.s32.totalorder 2, %s14
      // Predicated region
      $region41: #{tpu_custom_call.1} parent=5 // pred_check
        %p302 = pneg %p301
      $region42: #{tpu_custom_call.1} parent=5 // pred_check_branch
        %304 = sbr.rel (%p302) target = $region44
      $region43: #{tpu_custom_call.1} parent=5 // pred_region
        %s305 = ssub.s32 %s14, 2
        // Predicated region
        $region45: #{tpu_custom_call.1} parent=43 // pred_check
          %p306 = pneg %p111
        $region46: #{tpu_custom_call.1} parent=43 // pred_check_branch
          %308 = sbr.rel (%p306) target = $region48
        $region47: #{tpu_custom_call.1} parent=43 // pred_region
          %s309 = sand.u32 %s96, 1
          %s310 = scalar_lea.sflag [#allocation4], %s309
          %s311 = sand.u32 %s96, 1
          %s312 = scalar_lea.vmem [#allocation5], %s311
          %313 = dma.done %s310, 16
        $region48: #{tpu_custom_call.1} parent=43 // pred_fallthru
          _
      $region44: #{tpu_custom_call.1} parent=5 // pred_fallthru
        _
    $region6: #{tpu_custom_call.1} parent=1 // loop_footer
      %s18 = sadd.s32 1, %s14
    $region7: #{tpu_custom_call.1} parent=1 // loop_footer_branch
      %13 = sbr.rel target = $region3
    $region8: #{tpu_custom_call.1} parent=1 // loop_exit
      _
    %314 = vsyncpa [#allocation3], 1
    %s315 = scalar_lea.sflag [#allocation3], 1
    %316 = vsyncpa %s315, 1
    %317 = vsyncpa [#allocation4], 1
    %s318 = scalar_lea.sflag [#allocation4], 1
    %319 = vsyncpa %s318, 1

</llo_original>
